<compile_context>
chip_gen: v7x
topology: tpu7x:2x2x1
jax: 0.10.0
libtpu: 0.0.40
codegen_flags: <defaults>
</compile_context>

<pallas_src>
import functools

import jax
import jax.numpy as jnp
from jax import lax
from jax.experimental import pallas as pl
from jax.experimental.pallas import tpu as pltpu

NUM_LAYERS = 3
LANE = 128


def _round_up(x, m):
    return ((x + m - 1) // m) * m


def _pad_to(x, shape):
    pads = [(0, t - s) for s, t in zip(x.shape, shape)]
    return jnp.pad(x, pads)


def _row_tile_for_device():
    # 256-wide MXU on v6e / v7x; 128 on v5e (and a safe default elsewhere).
    try:
        kind = jax.devices()[0].device_kind.lower()
    except Exception:
        return 128
    return 128 if "v5" in kind else 256


def _vmem_capacity_bytes():
    try:
        info = pltpu.get_tpu_info()
        cap = getattr(info, "vmem_capacity_bytes", None)
        if cap:
            return int(cap)
    except Exception:
        pass
    return 64 * 1024 * 1024  # conservative: v7x per-TensorCore VMEM


def _fused_gcn_kernel(a_hbm, x_hbm, w_ref, b_ref, o_ref,
                      a_vmem, h_ref, xw_ref, copy_sem,
                      *, tm, n_row_tiles, num_layers):
    l = pl.program_id(0)   # layer index (outer, sequential)
    r = pl.program_id(1)   # output-row tile (inner)

    # One-time: DMA A_hat and the bf16 input features from HBM into
    # single-buffered VMEM scratch (A is reused by every grid step; H is the
    # persistent layer-activation buffer, seeded with x).
    @pl.when(jnp.logical_and(l == 0, r == 0))
    def _():
        cp_a = pltpu.make_async_copy(a_hbm, a_vmem, copy_sem.at[0])
        cp_x = pltpu.make_async_copy(x_hbm, h_ref, copy_sem.at[1])
        cp_a.start()
        cp_x.start()
        cp_x.wait()
        cp_a.wait()

    # Once per layer: feature transform XW_l = H_{l-1} @ W_l, chunked into
    # tm-row slices (bf16 x bf16 -> f32 on the MXU, stored back as bf16).
    @pl.when(r == 0)
    def _():
        def body(t, carry):
            row0 = pl.multiple_of(t * tm, tm)
            xw = jnp.dot(h_ref[pl.ds(row0, tm), :], w_ref[...],
                         preferred_element_type=jnp.float32)
            xw_ref[pl.ds(row0, tm), :] = xw.astype(xw_ref.dtype)
            return carry
        lax.fori_loop(0, n_row_tiles, body, 0, unroll=True)

    # Aggregation for this row tile: A_hat[rows, :] @ XW_l + b_l (f32 acc).
    row = pl.multiple_of(r * tm, tm)
    a_rows = a_vmem[pl.ds(row, tm), :]                       # bf16 (tm, n_pad)
    h = jnp.dot(a_rows, xw_ref[...], preferred_element_type=jnp.float32)
    h = h + b_ref[...]                                       # f32 epilogue

    # Hidden layers feed ReLU(H) (bf16) into the next layer.  Padded rows of H
    # end up holding relu(bias); harmless because the padded COLUMNS of A_hat
    # are zero, so they never reach a real output row.
    @pl.when(l < num_layers - 1)
    def _():
        h_ref[pl.ds(row, tm), :] = jnp.maximum(h, 0.0).astype(h_ref.dtype)

    # Final layer: un-activated result into the lane-dense resident f32 slab.
    @pl.when(l == num_layers - 1)
    def _():
        o_ref[pl.ds(row, tm), :] = h.astype(o_ref.dtype)


def gcn_three_forward(a_hat, features, params):
    """GCN_THREE.forward, fused into one Pallas kernel."""
    w1, b1, w2, b2, w3, b3 = params
    n, in_size = features.shape
    hid_size = w1.shape[1]
    out_size = w3.shape[1]

    f_pad = _round_up(max(in_size, hid_size, out_size), LANE)
    tm = _row_tile_for_device()
    n_pad = _round_up(n, tm)
    n_row_tiles = n_pad // tm

    # Padded / packed operands.  Every MXU operand is bf16; acc stays f32.
    a_p = _pad_to(a_hat.astype(jnp.float32), (n_pad, n_pad)).astype(jnp.bfloat16)
    x_p = _pad_to(features.astype(jnp.float32), (n_pad, f_pad)).astype(jnp.bfloat16)
    w_stack = jnp.stack(
        [_pad_to(w.astype(jnp.float32), (f_pad, f_pad)) for w in (w1, w2, w3)]
    ).astype(jnp.bfloat16)
    b_stack = jnp.stack(
        [_pad_to(b.astype(jnp.float32), (f_pad,)).reshape(1, f_pad)
         for b in (b1, b2, b3)])

    grid = (NUM_LAYERS, n_row_tiles)
    kernel = functools.partial(_fused_gcn_kernel, tm=tm,
                               n_row_tiles=n_row_tiles, num_layers=NUM_LAYERS)

    # Resident VMEM footprint (single-buffered A/H/XW scratch + streamed W/b +
    # double-buffered output slab) plus slack for compiler temporaries.
    vmem_need = (
        n_pad * n_pad * 2            # A_hat scratch (bf16, single buffer)
        + 2 * n_pad * f_pad * 2      # H + XW scratch (bf16)
        + 2 * n_pad * f_pad * 4      # output slab (f32, double-buffered)
        + 2 * f_pad * f_pad * 2      # W (bf16, double-buffered)
        + 2 * f_pad * 4              # bias
        + (4 << 20))
    vmem_limit = min(max(vmem_need, 32 << 20),
                     int(_vmem_capacity_bytes() * 0.9))
    # TODO(synk): K-panel-streamed fallback when resident A_hat exceeds VMEM.

    flops = NUM_LAYERS * (2 * n_pad * n_pad * f_pad + 2 * n_pad * f_pad * f_pad)
    bytes_accessed = (a_p.size * 2 + x_p.size * 2 + w_stack.size * 2
                      + b_stack.size * 4 + n_pad * f_pad * 4)

    out = pl.pallas_call(
        kernel,
        out_shape=jax.ShapeDtypeStruct((n_pad, f_pad), jnp.float32),
        grid_spec=pltpu.PrefetchScalarGridSpec(
            num_scalar_prefetch=0,
            grid=grid,
            in_specs=[
                # A_hat and x stay in HBM; DMA'd once into VMEM scratch.
                pl.BlockSpec(memory_space=pl.ANY),
                pl.BlockSpec(memory_space=pl.ANY),
                # Per-layer weight / bias, streamed along the layer axis.
                pl.BlockSpec((None, f_pad, f_pad), lambda l, r: (l, 0, 0)),
                pl.BlockSpec((None, 1, f_pad), lambda l, r: (l, 0, 0)),
            ],
            # Lane-dense resident output slab; written only on the last layer,
            # flushed to HBM once at the end of the grid.
            out_specs=pl.BlockSpec((n_pad, f_pad), lambda l, r: (0, 0)),
            scratch_shapes=[
                pltpu.VMEM((n_pad, n_pad), jnp.bfloat16),   # A_hat (resident)
                pltpu.VMEM((n_pad, f_pad), jnp.bfloat16),   # H across layers
                pltpu.VMEM((n_pad, f_pad), jnp.bfloat16),   # XW of current layer
                pltpu.SemaphoreType.DMA((2,)),
            ],
        ),
        compiler_params=pltpu.CompilerParams(
            # Row tiles share the H scratch across the sequential layer axis,
            # so both axes stay "arbitrary" (no megacore split of row tiles).
            dimension_semantics=("arbitrary", "arbitrary"),
            vmem_limit_bytes=vmem_limit,
        ),
        cost_estimate=pl.CostEstimate(
            flops=flops, transcendentals=0, bytes_accessed=bytes_accessed),
    )(a_p, x_p, w_stack, b_stack)

    return out[:n, :out_size]


def _xavier(key, fan_in, fan_out):
    limit = jnp.sqrt(6.0 / (fan_in + fan_out))
    return jax.random.uniform(
        key, (fan_in, fan_out), minval=-limit, maxval=limit, dtype=jnp.float32)


def init_params(key, in_size, hid_size, out_size):
    k1, k2, k3 = jax.random.split(key, 3)
    w1 = _xavier(k1, in_size, hid_size)
    b1 = jnp.zeros((hid_size,), jnp.float32)
    w2 = _xavier(k2, hid_size, hid_size)
    b2 = jnp.zeros((hid_size,), jnp.float32)
    w3 = _xavier(k3, hid_size, out_size)
    b3 = jnp.zeros((out_size,), jnp.float32)
    return (w1, b1, w2, b2, w3, b3)


def build_normalized_adjacency(key, n):
    """Deterministic random undirected graph with self-loops,
    A_hat = D^{-1/2} (A + I) D^{-1/2} (DGL norm='both')."""
    probs = jax.random.uniform(key, (n, n))
    adj = (probs < 0.3).astype(jnp.float32)
    adj = jnp.maximum(adj, adj.T)                           # symmetrize
    adj = jnp.maximum(adj, jnp.eye(n, dtype=jnp.float32))   # self-loops
    deg = jnp.sum(adj, axis=1)
    d_inv_sqrt = 1.0 / jnp.sqrt(deg)
    return adj * d_inv_sqrt[:, None] * d_inv_sqrt[None, :]


if __name__ == "__main__":
    key = jax.random.PRNGKey(0)
    k_graph, k_feat, k_param = jax.random.split(key, 3)

    num_nodes = 256
    in_size, hid_size, out_size = 16, 32, 8

    a_hat = build_normalized_adjacency(k_graph, num_nodes)
    features = jax.random.normal(k_feat, (num_nodes, in_size), dtype=jnp.float32)
    params = init_params(k_param, in_size, hid_size, out_size)

    out = gcn_three_forward(a_hat, features, params)
    out = jax.block_until_ready(out)

    # Pure-JAX f32 reference of the same math.
    w1, b1, w2, b2, w3, b3 = params
    h = jnp.maximum(a_hat @ (features @ w1) + b1, 0.0)
    h = jnp.maximum(a_hat @ (h @ w2) + b2, 0.0)
    ref = a_hat @ (h @ w3) + b3

    assert out.shape == (num_nodes, out_size)
    # bf16 MXU operands with f32 accumulation => normalized-error check.
    rel_err = jnp.max(jnp.abs(out - ref)) / (jnp.max(jnp.abs(ref)) + 1e-6)
    assert rel_err < 5e-2, f"rel_err={rel_err}"

    print("KERNEL_OK")
</pallas_src>

<mosaic_0001>
module attributes {stable_mosaic.version = 11 : i64} {
  func.func @_fused_gcn_kernel(%arg0: i32, %arg1: i32, %arg2: memref<256x256xbf16, #tpu.memory_space<any>>, %arg3: memref<256x128xbf16, #tpu.memory_space<any>>, %arg4: memref<1x128x128xbf16, #tpu.memory_space<vmem>>, %arg5: memref<1x1x128xf32, #tpu.memory_space<vmem>>, %arg6: memref<256x128xf32, #tpu.memory_space<vmem>>, %arg7: memref<256x256xbf16, #tpu.memory_space<vmem>>, %arg8: memref<256x128xbf16, #tpu.memory_space<vmem>>, %arg9: memref<256x128xbf16, #tpu.memory_space<vmem>>, %arg10: memref<2x!tpu.dma_semaphore, #tpu.memory_space<semaphore_mem>>) attributes {dimension_semantics = [#tpu.dimension_semantics<arbitrary>, #tpu.dimension_semantics<arbitrary>], iteration_bounds = array<i64: 3, 1>, scalar_prefetch = 0 : i64, scratch_operands = 4 : i64, tpu.core_type = #tpu.core_type<tc>, window_params = [{}, {}, {transform_indices = @transform_2, window_bounds = array<i64: 1, 128, 128>}, {transform_indices = @transform_3, window_bounds = array<i64: 1, 1, 128>}, {pipeline_mode = #tpu.pipeline_mode<synchronous>, transform_indices = @transform_4, window_bounds = array<i64: 256, 128>}]} {
    %c0_i32 = arith.constant 0 : i32
    %0 = arith.cmpi eq, %arg0, %c0_i32 : i32
    %c0_i32_0 = arith.constant 0 : i32
    %1 = arith.cmpi eq, %arg1, %c0_i32_0 : i32
    %2 = arith.andi %0, %1 : i1
    %3 = arith.extui %2 : i1 to i32
    %c0_i32_1 = arith.constant 0 : i32
    %4 = arith.cmpi ne, %3, %c0_i32_1 : i32
    scf.if %4 {
      %c0_i32_12 = arith.constant 0 : i32
      %24 = tpu.memref_slice %arg10[%c0_i32_12] : memref<2x!tpu.dma_semaphore, #tpu.memory_space<semaphore_mem>> -> memref<1x!tpu.dma_semaphore, #tpu.memory_space<semaphore_mem>>
      %25 = tpu.memref_squeeze %24 : memref<1x!tpu.dma_semaphore, #tpu.memory_space<semaphore_mem>> -> memref<!tpu.dma_semaphore, #tpu.memory_space<semaphore_mem>>
      tpu.enqueue_dma source(%arg2 : memref<256x256xbf16, #tpu.memory_space<any>>) target(%arg7 : memref<256x256xbf16, #tpu.memory_space<vmem>>) target_semaphore(%25 : memref<!tpu.dma_semaphore, #tpu.memory_space<semaphore_mem>>)
      %c1_i32 = arith.constant 1 : i32
      %26 = tpu.memref_slice %arg10[%c1_i32] : memref<2x!tpu.dma_semaphore, #tpu.memory_space<semaphore_mem>> -> memref<1x!tpu.dma_semaphore, #tpu.memory_space<semaphore_mem>>
      %27 = tpu.memref_squeeze %26 : memref<1x!tpu.dma_semaphore, #tpu.memory_space<semaphore_mem>> -> memref<!tpu.dma_semaphore, #tpu.memory_space<semaphore_mem>>
      tpu.enqueue_dma source(%arg3 : memref<256x128xbf16, #tpu.memory_space<any>>) target(%arg8 : memref<256x128xbf16, #tpu.memory_space<vmem>>) target_semaphore(%27 : memref<!tpu.dma_semaphore, #tpu.memory_space<semaphore_mem>>)
      %c1_i32_13 = arith.constant 1 : i32
      %28 = tpu.memref_slice %arg10[%c1_i32_13] : memref<2x!tpu.dma_semaphore, #tpu.memory_space<semaphore_mem>> -> memref<1x!tpu.dma_semaphore, #tpu.memory_space<semaphore_mem>>
      %29 = tpu.memref_squeeze %28 : memref<1x!tpu.dma_semaphore, #tpu.memory_space<semaphore_mem>> -> memref<!tpu.dma_semaphore, #tpu.memory_space<semaphore_mem>>
      tpu.wait_dma2 semaphore(%29 : memref<!tpu.dma_semaphore, #tpu.memory_space<semaphore_mem>>) src(%arg3 : memref<256x128xbf16, #tpu.memory_space<any>>) dst(%arg8 : memref<256x128xbf16, #tpu.memory_space<vmem>>)
      %c0_i32_14 = arith.constant 0 : i32
      %30 = tpu.memref_slice %arg10[%c0_i32_14] : memref<2x!tpu.dma_semaphore, #tpu.memory_space<semaphore_mem>> -> memref<1x!tpu.dma_semaphore, #tpu.memory_space<semaphore_mem>>
      %31 = tpu.memref_squeeze %30 : memref<1x!tpu.dma_semaphore, #tpu.memory_space<semaphore_mem>> -> memref<!tpu.dma_semaphore, #tpu.memory_space<semaphore_mem>>
      tpu.wait_dma2 semaphore(%31 : memref<!tpu.dma_semaphore, #tpu.memory_space<semaphore_mem>>) src(%arg2 : memref<256x256xbf16, #tpu.memory_space<any>>) dst(%arg7 : memref<256x256xbf16, #tpu.memory_space<vmem>>)
    } else {
    }
    %c0_i32_2 = arith.constant 0 : i32
    %5 = arith.cmpi eq, %arg1, %c0_i32_2 : i32
    %6 = arith.extui %5 : i1 to i32
    %c0_i32_3 = arith.constant 0 : i32
    %7 = arith.cmpi ne, %6, %c0_i32_3 : i32
    scf.if %7 {
      %c0_i32_12 = arith.constant 0 : i32
      %c256_i32_13 = arith.constant 256 : i32
      %24 = arith.muli %c0_i32_12, %c256_i32_13 : i32
      %25 = tpu.assume_multiple %24, 256 : i32
      %26 = arith.index_cast %25 : i32 to index
      %c0_14 = arith.constant 0 : index
      %27 = vector.load %arg8[%26, %c0_14] : memref<256x128xbf16, #tpu.memory_space<vmem>>, vector<256x128xbf16>
      %c0_15 = arith.constant 0 : index
      %c0_16 = arith.constant 0 : index
      %c0_17 = arith.constant 0 : index
      %28 = vector.load %arg4[%c0_15, %c0_16, %c0_17] : memref<1x128x128xbf16, #tpu.memory_space<vmem>>, vector<1x128x128xbf16>
      %29 = vector.shape_cast %28 : vector<1x128x128xbf16> to vector<128x128xbf16>
      %cst_18 = arith.constant dense<0.000000e+00> : vector<256x128xf32>
      %30 = tpu.matmul %27, %29, %cst_18 {dimension_numbers = #tpu.dot_dimension_numbers<[1], [0], [0], [1], [0, 0, 1, 1], [], []>} : vector<256x128xbf16>, vector<128x128xbf16>, vector<256x128xf32> -> vector<256x128xf32>
      %31 = arith.truncf %30 : vector<256x128xf32> to vector<256x128xbf16>
      %32 = arith.index_cast %25 : i32 to index
      %c0_19 = arith.constant 0 : index
      %33 = vector.load %arg9[%32, %c0_19] : memref<256x128xbf16, #tpu.memory_space<vmem>>, vector<256x128xbf16>
      tpu.vector_store %arg9[%32, %c0_19], %31 {strides = array<i32>} : memref<256x128xbf16, #tpu.memory_space<vmem>>, vector<256x128xbf16>,
      %c1_i32 = arith.constant 1 : i32
    } else {
    }
    %c256_i32 = arith.constant 256 : i32
    %8 = arith.muli %arg1, %c256_i32 : i32
    %9 = tpu.assume_multiple %8, 256 : i32
    %10 = arith.index_cast %9 : i32 to index
    %c0 = arith.constant 0 : index
    %11 = vector.load %arg7[%10, %c0] : memref<256x256xbf16, #tpu.memory_space<vmem>>, vector<256x256xbf16>
    %c0_4 = arith.constant 0 : index
    %c0_5 = arith.constant 0 : index
    %12 = vector.load %arg9[%c0_4, %c0_5] : memref<256x128xbf16, #tpu.memory_space<vmem>>, vector<256x128xbf16>
    %cst = arith.constant dense<0.000000e+00> : vector<256x128xf32>
    %13 = tpu.matmul %11, %12, %cst {dimension_numbers = #tpu.dot_dimension_numbers<[1], [0], [0], [1], [0, 0, 1, 1], [], []>} : vector<256x256xbf16>, vector<256x128xbf16>, vector<256x128xf32> -> vector<256x128xf32>
    %c0_6 = arith.constant 0 : index
    %c0_7 = arith.constant 0 : index
    %c0_8 = arith.constant 0 : index
    %14 = vector.load %arg5[%c0_6, %c0_7, %c0_8] : memref<1x1x128xf32, #tpu.memory_space<vmem>>, vector<1x1x128xf32>
    %15 = vector.shape_cast %14 : vector<1x1x128xf32> to vector<1x128xf32>
    %16 = vector.broadcast %15 : vector<1x128xf32> to vector<256x128xf32>
    %17 = arith.addf %13, %16 : vector<256x128xf32>
    %c2_i32 = arith.constant 2 : i32
    %18 = arith.cmpi slt, %arg0, %c2_i32 : i32
    %19 = arith.extui %18 : i1 to i32
    %c0_i32_9 = arith.constant 0 : i32
    %20 = arith.cmpi ne, %19, %c0_i32_9 : i32
    scf.if %20 {
      %cst_12 = arith.constant 0.000000e+00 : f32
      %24 = vector.broadcast %cst_12 : f32 to vector<256x128xf32>
      %25 = arith.maximumf %17, %24 : vector<256x128xf32>
      %26 = arith.truncf %25 : vector<256x128xf32> to vector<256x128xbf16>
      %27 = arith.index_cast %9 : i32 to index
      %c0_13 = arith.constant 0 : index
      %28 = vector.load %arg8[%27, %c0_13] : memref<256x128xbf16, #tpu.memory_space<vmem>>, vector<256x128xbf16>
      tpu.vector_store %arg8[%27, %c0_13], %26 {strides = array<i32>} : memref<256x128xbf16, #tpu.memory_space<vmem>>, vector<256x128xbf16>,
    } else {
    }
    %c2_i32_10 = arith.constant 2 : i32
    %21 = arith.cmpi eq, %arg0, %c2_i32_10 : i32
    %22 = arith.extui %21 : i1 to i32
    %c0_i32_11 = arith.constant 0 : i32
    %23 = arith.cmpi ne, %22, %c0_i32_11 : i32
    scf.if %23 {
      %24 = arith.index_cast %9 : i32 to index
      %c0_12 = arith.constant 0 : index
      %25 = vector.load %arg6[%24, %c0_12] : memref<256x128xf32, #tpu.memory_space<vmem>>, vector<256x128xf32>
      tpu.vector_store %arg6[%24, %c0_12], %17 {strides = array<i32>} : memref<256x128xf32, #tpu.memory_space<vmem>>, vector<256x128xf32>,
    } else {
    }
    return
  }
  func.func @transform_2(%arg0: i32, %arg1: i32) -> (i32, i32, i32) {
    %c0_i32 = arith.constant 0 : i32
    %c0_i32_0 = arith.constant 0 : i32
    %c0_i32_1 = arith.constant 0 : i32
    return %arg0, %c0_i32, %c0_i32_0 : i32, i32, i32
  }
  func.func @transform_3(%arg0: i32, %arg1: i32) -> (i32, i32, i32) {
    %c0_i32 = arith.constant 0 : i32
    %c0_i32_0 = arith.constant 0 : i32
    %c0_i32_1 = arith.constant 0 : i32
    return %arg0, %c0_i32, %c0_i32_0 : i32, i32, i32
  }
  func.func @transform_4(%arg0: i32, %arg1: i32) -> (i32, i32) {
    %c0_i32 = arith.constant 0 : i32
    %c0_i32_0 = arith.constant 0 : i32
    %c0_i32_1 = arith.constant 0 : i32
    return %c0_i32, %c0_i32_0 : i32, i32
  }
}

</mosaic_0001>

<llo_original>
// kernel: tpu_custom_call.1
$region0: #{tpu_custom_call.1}
  #allocation0 [shape = 'u32[]', space=smem, size = 0x4, offset = 0x4, fixed_abs, tag = 'smem constant byte address 0x4 - core index']
  #allocation1 [shape = 'u32[144,128]{1,0:T(1,128)}', space=vmem, size = 0x12000, scoped, tag = 'internal scratch']
  #allocation2 [shape = 'bf16[256,256]{1,0:T(16,128)(2,1)}', space=vmem, size = 0x20000, scoped, tag = 'scratch operand']
  #allocation3 [shape = 'bf16[256,128]{1,0:T(16,128)(2,1)}', space=vmem, size = 0x10000, scoped, tag = 'scratch operand']
  #allocation4 [shape = 'bf16[256,128]{1,0:T(16,128)(2,1)}', space=vmem, size = 0x10000, scoped, tag = 'scratch operand']
  #allocation5 [shape = 's32[2]{0}', space=sflag, size = 0x8, scoped, tag = 'scratch operand']
  #allocation10 [shape = 's32[]', space=sflag, size = 0x4, offset = 0, fixed_abs, tag = 'sflag constant byte address 0x0 - dummy sync flag']
  #allocation12 [shape = 's32[]', space=sflag, size = 0x4, offset = 0, fixed_abs, tag = 'sflag constant byte address 0x0 - dummy sync flag']
  #allocation13 [shape = 's32[]', space=sflag, size = 0x4, offset = 0, fixed_abs, tag = 'sflag constant byte address 0x0 - dummy sync flag']
  #allocation14 [shape = 'u32[]', space=smem, size = 0x4, offset = 0x44, fixed_abs, tag = 'smem constant byte address 0x44 - assertion arg 0']
  #allocation15 [shape = 'u32[]', space=smem, size = 0x4, offset = 0x48, fixed_abs, tag = 'smem constant byte address 0x48 - assertion arg 1']
  %s0 = inlined_call_operand.hbm [shape: bf16[256,256], index: 0, kind: input, shape index: {}]
  %s1 = inlined_call_operand.hbm [shape: bf16[256,128], index: 1, kind: input, shape index: {}]
  %s2 = inlined_call_operand.hbm [shape: bf16[3,128,128], index: 2, kind: input, shape index: {}]
  %s3 = inlined_call_operand.vmem [shape: f32[3,1,128], index: 3, kind: input, shape index: {}]
  %s4 = inlined_call_operand.hbm [shape: f32[256,128], index: 4, kind: output, shape index: {}]
  %s5 = sld [smem:[#allocation0]]
  $region65: #{tpu_custom_call.1} parent=0
    _
  %s7 = ssub.s32 1, %s5
  %s8 = scalar_select 0, %s7, %s5
  $region1: #{tpu_custom_call.1} parent=0
    #allocation6 [shape = 'u8[65536]{0}', space=vmem, size = 0x10000, scoped, tag = 'input window, operand 2']
    #allocation7 [shape = 's32[2]{0}', space=sflag, size = 0x8, scoped, tag = 'scoped memory for tpu_custom_call.1']
    #allocation8 [shape = 's32[2]{0}', space=sflag, size = 0x8, scoped, tag = 'scoped memory for tpu_custom_call.1']
    #allocation9 [shape = 'u8[131072]{0}', space=vmem, size = 0x20000, scoped, tag = 'output window, operand 0, single buffered']
    %9 = vsyncpa [#allocation7], 0
    %s10 = scalar_lea.sflag [#allocation7], 1
    %11 = vsyncpa %s10, 0
    %12 = vsyncpa [#allocation8], 0
    loop: start=0, step=1, limit=5
    $region2: #{tpu_custom_call.1} parent=1 // loop_pre_header
      _
    $region3: #{tpu_custom_call.1} parent=1 // loop_header
      %s14 = sphi 0, %s18
      %p15 = scmp.ge.s32.totalorder %s14, 5
      %s21 = sphi 0, %s33
      %s22 = sphi 0, %s29
      %s23 = sphi 0, %s21
      %s24 = sphi 0, %s22
      %s25 = sphi 0, %s23
      %s26 = sphi 0, %s24
      %s36 = sphi 0, %s38
      %s39 = sphi 0, %s36
      %s40 = sphi 0, %s39
      %s56 = sphi 0, %s40
      %s62 = sphi 0, %s64
      %s65 = sphi 0, %s62
      %s66 = sphi 0, %s65
      %s82 = sphi 0, %s66
      %s86 = sphi 0, %s86
      %s88 = sphi 0, %s86
      %s89 = sphi 0, %s88
      %s103 = sphi 0, %s89
    $region4: #{tpu_custom_call.1} parent=1 // loop_header_branch
      %17 = sbr.rel (%p15) target = $region8
    $region5: #{tpu_custom_call.1} parent=1 // loop_body
      %s19 = ssub.s32 %s14, 1
      %s20 = ssub.s32 %s14, 2
      %s27 = sadd.s32 1, %s22
      %p28 = scmp.ge.s32.totalorder %s27, 1
      %s29 = scalar_select %p28, 0, %s27
      %s30 = sadd.s32 1, %s21
      %s31 = scalar_select %p28, %s30, %s21
      %p32 = scmp.ge.s32.totalorder %s31, 3
      %s33 = scalar_select %p32, 0, %s31
      %s34 = ssub.s32 %s21, %s33
      %p35 = scmp.eq.s32.totalorder %s34, 0
      %s37 = sadd.s32 %s36, 1
      %s38 = scalar_select %p35, %s36, %s37
      %p41 = pneg %p35
      %p42 = scmp.eq.s32.totalorder %s14, 2
      %p43 = por %p41, %p42
      %p44 = scmp.ne.s32.totalorder %s36, %s39
      %p45 = scmp.eq.s32.totalorder %s14, 0
      %p46 = por %p44, %p45
      %p47 = scmp.ne.s32.totalorder %s36, %s39
      %p48 = scmp.eq.s32.totalorder %s19, 2
      %p49 = por %p47, %p48
      %p50 = scmp.ne.s32.totalorder %s39, %s40
      %p51 = scmp.eq.s32.totalorder %s19, 0
      %p52 = por %p50, %p51
      %p53 = scmp.ne.s32.totalorder %s39, %s40
      %p54 = scmp.eq.s32.totalorder %s20, 2
      %p55 = por %p53, %p54
      %p57 = scmp.ne.s32.totalorder %s40, %s56
      %p58 = scmp.eq.s32.totalorder %s20, 0
      %p59 = por %p57, %p58
      %s60 = ssub.s32 %s21, %s33
      %p61 = scmp.eq.s32.totalorder %s60, 0
      %s63 = sadd.s32 %s62, 1
      %s64 = scalar_select %p61, %s62, %s63
      %p67 = pneg %p61
      %p68 = scmp.eq.s32.totalorder %s14, 2
      %p69 = por %p67, %p68
      %p70 = scmp.ne.s32.totalorder %s62, %s65
      %p71 = scmp.eq.s32.totalorder %s14, 0
      %p72 = por %p70, %p71
      %p73 = scmp.ne.s32.totalorder %s62, %s65
      %p74 = scmp.eq.s32.totalorder %s19, 2
      %p75 = por %p73, %p74
      %p76 = scmp.ne.s32.totalorder %s65, %s66
      %p77 = scmp.eq.s32.totalorder %s19, 0
      %p78 = por %p76, %p77
      %p79 = scmp.ne.s32.totalorder %s65, %s66
      %p80 = scmp.eq.s32.totalorder %s20, 2
      %p81 = por %p79, %p80
      %p83 = scmp.ne.s32.totalorder %s66, %s82
      %p84 = scmp.eq.s32.totalorder %s20, 0
      %p85 = por %p83, %p84
      %s87 = sadd.s32 %s86, 1
      %p90 = scmp.eq.s32.totalorder %s14, 2
      %p91 = scmp.ne.s32.totalorder %s86, %s88
      %p92 = scmp.eq.s32.totalorder %s14, 0
      %p93 = por %p91, %p92
      %p94 = scmp.ne.s32.totalorder %s86, %s88
      %p95 = scmp.eq.s32.totalorder %s19, 2
      %p96 = por %p94, %p95
      %p97 = scmp.ne.s32.totalorder %s88, %s89
      %p98 = scmp.eq.s32.totalorder %s19, 0
      %p99 = por %p97, %p98
      %p100 = scmp.ne.s32.totalorder %s88, %s89
      %p101 = scmp.eq.s32.totalorder %s20, 2
      %p102 = por %p100, %p101
      %p104 = scmp.ne.s32.totalorder %s89, %s103
      %p105 = scmp.eq.s32.totalorder %s20, 0
      %p106 = por %p104, %p105
      %p107 = scmp.le.s32.totalorder 1, %s14
      %p108 = scmp.lt.s32.totalorder %s14, 4
      %p109 = pnand %p107, %p108
      %p110 = pneg %p109
      // Predicated region
      $region9: #{tpu_custom_call.1} parent=5 // pred_check
        _
      $region10: #{tpu_custom_call.1} parent=5 // pred_check_branch
        %112 = sbr.rel (%p109) target = $region12
      $region11: #{tpu_custom_call.1} parent=5 // pred_region
        %s113 = ssub.s32 %s14, 1
      $region12: #{tpu_custom_call.1} parent=5 // pred_fallthru
        _
      %p114 = scmp.lt.s32.totalorder %s14, 3
      // Predicated region
      $region13: #{tpu_custom_call.1} parent=5 // pred_check
        %p115 = pneg %p114
      $region14: #{tpu_custom_call.1} parent=5 // pred_check_branch
        %117 = sbr.rel (%p115) target = $region16
      $region15: #{tpu_custom_call.1} parent=5 // pred_region
        // Predicated region
        $region17: #{tpu_custom_call.1} parent=15 // pred_check
          %p118 = pneg %p46
        $region18: #{tpu_custom_call.1} parent=15 // pred_check_branch
          %120 = sbr.rel (%p118) target = $region20
        $region19: #{tpu_custom_call.1} parent=15 // pred_region
          %s121 = sand.u32 %s36, 1
          %s122 = scalar_lea.sflag [#allocation7], %s121
          %s123 = sand.u32 %s36, 1
          %s124 = smul.addr %s123, 64
          %s125 = scalar_lea.vmem [#allocation6], %s124
          %s127 = ssub.s32 1024, 1024
          %128 = vsyncadd %s122, %s127
          %s129 = smul.addr %s21, 16
          %s130 = smul.addr %s129, 64
          %s131 = scalar_lea.hbm %s2, %s130
          %s132 = sshll.u32 %s125, 4
          %s133 = int_to_ptr.vmem [resolvable:$true] %s132
          %138 = dma.hbm_to_vmem [thread:$0]  %s131, 1024, %s133, %s122, 64, 64, 4
        $region20: #{tpu_custom_call.1} parent=15 // pred_fallthru
          _
        // Predicated region
        $region21: #{tpu_custom_call.1} parent=15 // pred_check
          %p139 = pneg %p72
        $region22: #{tpu_custom_call.1} parent=15 // pred_check_branch
          %141 = sbr.rel (%p139) target = $region24
        $region23: #{tpu_custom_call.1} parent=15 // pred_region
          %p142 = scmp.lt.s32.totalorder %s21, 2
          %s143 = scalar_select %p142, %s21, 2
          %s144 = scalar_lea.vmem %s3, %s143
        $region24: #{tpu_custom_call.1} parent=15 // pred_fallthru
          _
      $region16: #{tpu_custom_call.1} parent=5 // pred_fallthru
        _
      %p145 = scmp.le.s32.totalorder 1, %s14
      %p146 = scmp.lt.s32.totalorder %s14, 4
      %p147 = pnand %p145, %p146
      %p148 = pneg %p147
      // Predicated region
      $region25: #{tpu_custom_call.1} parent=5 // pred_check
        _
      $region26: #{tpu_custom_call.1} parent=5 // pred_check_branch
        %150 = sbr.rel (%p147) target = $region28
      $region27: #{tpu_custom_call.1} parent=5 // pred_region
        %s151 = ssub.s32 %s14, 1
        %s152 = sand.u32 %s39, 1
        %s153 = scalar_lea.sflag [#allocation7], %s152
        %s154 = sand.u32 %s39, 1
        %s155 = smul.addr %s154, 64
        %s156 = scalar_lea.vmem [#allocation6], %s155
        // Predicated region
        $region29: #{tpu_custom_call.1} parent=27 // pred_check
          %p157 = pneg %p52
        $region30: #{tpu_custom_call.1} parent=27 // pred_check_branch
          %159 = sbr.rel (%p157) target = $region32
        $region31: #{tpu_custom_call.1} parent=27 // pred_region
          %160 = dma.done %s153, 1024
        $region32: #{tpu_custom_call.1} parent=27 // pred_fallthru
          _
        %s161 = sand.u32 %s39, 1
        %s162 = scalar_lea.sflag [#allocation7], %s161
        %s163 = sand.u32 %s39, 1
        %s164 = smul.addr %s163, 64
        %s165 = scalar_lea.vmem [#allocation6], %s164
        %p166 = pneg %p52
        %p167 = pneg %p49
        %p168 = scmp.lt.s32.totalorder %s23, 2
        %s169 = scalar_select %p168, %s23, 2
        %s170 = scalar_lea.vmem %s3, %s169
        %p171 = pneg %p78
        %p172 = pneg %p75
        %p173 = pneg %p99
        %p174 = pneg %p96
        %p175 = scmp.lt.s32.totalorder %s23, 2
        %s176 = scalar_select %p175, %s23, 2
        %s177 = scalar_lea.vmem %s3, %s176
        %p179 = scmp.eq.s32.totalorder %s23, 0
        %p180 = scmp.eq.s32.totalorder %s24, 0
        %p181 = pnand %p179, %p180
        %p182 = pneg %p181
        // Predicated region
        $region33: #{tpu_custom_call.1} parent=27 // pred_check
          _
        $region34: #{tpu_custom_call.1} parent=27 // pred_check_branch
          %184 = sbr.rel (%p181) target = $region36
        $region35: #{tpu_custom_call.1} parent=27 // pred_region
          #allocation11 [shape = 'u32[9]{0}', space=smem, size = 0x24, scoped, tag = 'DMA stride descriptor']
          %s186 = sshll.u32 1, 14
          %s187 = sxor.u32 4294967295, %s186
          %s189 = sld [smem:[#allocation0]]
          %s190 = sadd.s32 2, %s189
          %s192 = sshll.u32 7, 26
          %s193 = sxor.u32 4294967295, %s192
          %s194 = sand.u32 0, %s193
          %s195 = sshll.u32 %s190, 26
          %s196 = sor.u32 %s194, %s195
          %s197 = sshll.u32 [#allocation2], 4
          %s198 = int_to_ptr.vmem [resolvable:$true] %s197
          %201 = sst [smem:[#allocation11]] 256
          %s202 = scalar_lea.smem [#allocation11], 1
          %203 = sst [smem:[%s202]] 256
          %s204 = scalar_lea.smem [#allocation11], 2
          %205 = sst [smem:[%s204]] 2
          %s206 = scalar_lea.smem [#allocation11], 3
          %207 = sst [smem:[%s206]] 64
          %s208 = scalar_lea.smem [#allocation11], 4
          %209 = sst [smem:[%s208]] 128
          %s210 = scalar_lea.smem [#allocation11], 5
          %211 = sst [smem:[%s210]] 2
          %s212 = scalar_lea.smem [#allocation11], 6
          %213 = sst [smem:[%s212]] 128
          %s214 = scalar_lea.smem [#allocation11], 7
          %215 = sst [smem:[%s214]] 64
          %s216 = scalar_lea.smem [#allocation11], 8
          %217 = sst [smem:[%s216]] 4
          %219 = dma.general %s0, 4096, %s198, [#allocation5], [#allocation10], [#allocation11], %s196, 0
          %s220 = scalar_lea.sflag [#allocation5], 1
          // Predicated region
          $region37: #{tpu_custom_call.1} parent=35 // pred_check
            _
          $region38: #{tpu_custom_call.1} parent=35 // pred_check_branch
            %222 = sbr.rel target = $region40
          $region39: #{tpu_custom_call.1} parent=35 // pred_region
            %223 = sst [smem:[#allocation14]] [#allocation13]
            %224 = sst [smem:[#allocation15]] [#allocation12]
          $region40: #{tpu_custom_call.1} parent=35 // pred_fallthru
            _
          %226 = shalt.err (0)
          %s228 = sshll.u32 [#allocation3], 4
          %s229 = int_to_ptr.vmem [resolvable:$true] %s228
          %231 = dma.hbm_to_vmem [thread:$0]  %s1, 2048, %s229, %s220
          %s232 = smul.u32 4, 32
          %s233 = smul.u32 %s232, 1
          %s234 = sshll.u32 %s233, 4
          %235 = dma.done %s220, %s234
          %s236 = smul.u32 %s232, 2
          %s237 = sshll.u32 %s236, 4
          %238 = dma.done [#allocation5], %s237
        $region36: #{tpu_custom_call.1} parent=27 // pred_fallthru
          _
        // Predicated region
        $region41: #{tpu_custom_call.1} parent=27 // pred_check
          %p239 = pneg %p180
        $region42: #{tpu_custom_call.1} parent=27 // pred_check_branch
          %241 = sbr.rel (%p239) target = $region44
        $region43: #{tpu_custom_call.1} parent=27 // pred_region
          %v242 = vld [vmem:[#allocation3] sm:$0xff]
          %v243 = vld [vmem:[#allocation3 + $0x8] sm:$0xff]
          %v244 = vld [vmem:[#allocation3 + $0x10] sm:$0xff]
          %v245 = vld [vmem:[#allocation3 + $0x18] sm:$0xff]
          %v246 = vld [vmem:[#allocation3 + $0x20] sm:$0xff]
          %v247 = vld [vmem:[#allocation3 + $0x28] sm:$0xff]
          %v248 = vld [vmem:[#allocation3 + $0x30] sm:$0xff]
          %v249 = vld [vmem:[#allocation3 + $0x38] sm:$0xff]
          %v250 = vld [vmem:[#allocation3 + $0x40] sm:$0xff]
          %v251 = vld [vmem:[#allocation3 + $0x48] sm:$0xff]
          %v252 = vld [vmem:[#allocation3 + $0x50] sm:$0xff]
          %v253 = vld [vmem:[#allocation3 + $0x58] sm:$0xff]
          %v254 = vld [vmem:[#allocation3 + $0x60] sm:$0xff]
          %v255 = vld [vmem:[#allocation3 + $0x68] sm:$0xff]
          %v256 = vld [vmem:[#allocation3 + $0x70] sm:$0xff]
          %v257 = vld [vmem:[#allocation3 + $0x78] sm:$0xff]
          %v258 = vld [vmem:[%s156] sm:$0xf]
          %v259 = vld [vmem:[%s156 + $0x4] sm:$0xf]
          %v260 = vld [vmem:[%s156 + $0x8] sm:$0xf]
          %v261 = vld [vmem:[%s156 + $0xc] sm:$0xf]
          %v262 = vld [vmem:[%s156 + $0x10] sm:$0xf]
          %v263 = vld [vmem:[%s156 + $0x14] sm:$0xf]
          %v264 = vld [vmem:[%s156 + $0x18] sm:$0xf]
          %v265 = vld [vmem:[%s156 + $0x1c] sm:$0xf]
          %v266 = vld [vmem:[%s156 + $0x20] sm:$0xf]
          %v267 = vld [vmem:[%s156 + $0x24] sm:$0xf]
          %v268 = vld [vmem:[%s156 + $0x28] sm:$0xf]
          %v269 = vld [vmem:[%s156 + $0x2c] sm:$0xf]
          %v270 = vld [vmem:[%s156 + $0x30] sm:$0xf]
          %v271 = vld [vmem:[%s156 + $0x34] sm:$0xf]
          %v272 = vld [vmem:[%s156 + $0x38] sm:$0xf]
          %v273 = vld [vmem:[%s156 + $0x3c] sm:$0xf]
          %v290 = vunpack.c.l.b16 %v258
          %v291 = vunpack.c.l.b16 %v259
          %v292 = vunpack.c.l.b16 %v260
          %v293 = vunpack.c.l.b16 %v261
          %v294 = vunpack.c.l.b16 %v262
          %v295 = vunpack.c.l.b16 %v263
          %v296 = vunpack.c.l.b16 %v264
          %v297 = vunpack.c.l.b16 %v265
          %v298 = vunpack.c.l.b16 %v266
          %v299 = vunpack.c.l.b16 %v267
          %v300 = vunpack.c.l.b16 %v268
          %v301 = vunpack.c.l.b16 %v269
          %v302 = vunpack.c.l.b16 %v270
          %v303 = vunpack.c.l.b16 %v271
          %v304 = vunpack.c.l.b16 %v272
          %v305 = vunpack.c.l.b16 %v273
          %v306 = vpack.c.b16 %v291, %v290
          %v307 = vpack.c.b16 %v293, %v292
          %v308 = vpack.c.b16 %v295, %v294
          %v309 = vpack.c.b16 %v297, %v296
          %v310 = vpack.c.b16 %v299, %v298
          %v311 = vpack.c.b16 %v301, %v300
          %v312 = vpack.c.b16 %v303, %v302
          %v313 = vpack.c.b16 %v305, %v304
          %322 = vmatprep.subr.bf16.mxu0 0
          %323 = vmatpush1.bf16.msra.mxu0 %v306
          %324 = vmatprep.subr.bf16.mxu0 0
          %325 = vmatpush1.bf16.msra.mxu0 %v307
          %326 = vmatprep.subr.bf16.mxu0 0
          %327 = vmatpush1.bf16.msra.mxu0 %v308
          %328 = vmatprep.subr.bf16.mxu0 0
          %329 = vmatpush1.bf16.msra.mxu0 %v309
          %330 = vmatprep.subr.bf16.mxu0 0
          %331 = vmatpush1.bf16.msra.mxu0 %v310
          %332 = vmatprep.subr.bf16.mxu0 0
          %333 = vmatpush1.bf16.msra.mxu0 %v311
          %334 = vmatprep.subr.bf16.mxu0 0
          %335 = vmatpush1.bf16.msra.mxu0 %v312
          %336 = vmatprep.subr.bf16.mxu0 0
          %337 = vmatpush1.bf16.msra.mxu0 %v313
          %338 = vmatprep.subr.bf16.mxu0 0
          %339 = vmatpush1.bf16.msra.mxu0 0
          %340 = vmatprep.subr.bf16.mxu0 0
          %341 = vmatpush1.bf16.msra.mxu0 0
          %342 = vmatprep.subr.bf16.mxu0 0
          %343 = vmatpush1.bf16.msra.mxu0 0
          %344 = vmatprep.subr.bf16.mxu0 0
          %345 = vmatpush1.bf16.msra.mxu0 0
          %346 = vmatprep.subr.bf16.mxu0 0
          %347 = vmatpush1.bf16.msra.mxu0 0
          %348 = vmatprep.subr.bf16.mxu0 0
          %349 = vmatpush1.bf16.msra.mxu0 0
          %350 = vmatprep.subr.bf16.mxu0 0
          %351 = vmatpush1.bf16.msra.mxu0 0
          %352 = vmatprep.subr.bf16.mxu0 0
          %353 = vmatpush1.bf16.msra.mxu0 0
          %354 = vmatprep.mubr.bf16.mxu0 0
          %355 = vmatmul.mubr.bf16.gmra.mrb[0].mxu0 %v242
          %v356 = vpop.f32.mrb[0].mxu0
          %v357 = vadd.f32 0.0, %v356
          %v358 = vpop.f32.mrb[0].mxu0
          %v359 = vpop.f32.mrb[0].mxu0
          %v360 = vadd.f32 0.0, %v359
          %v361 = vpop.f32.mrb[0].mxu0
          %362 = vmatprep.mubr.bf16.mxu0 0
          %363 = vmatmul.mubr.bf16.gmra.mrb[0].mxu0 %v243
          %v364 = vpop.f32.mrb[0].mxu0
          %v365 = vadd.f32 0.0, %v364
          %v366 = vpop.f32.mrb[0].mxu0
          %v367 = vpop.f32.mrb[0].mxu0
          %v368 = vadd.f32 0.0, %v367
          %v369 = vpop.f32.mrb[0].mxu0
          %370 = vmatprep.mubr.bf16.mxu0 0
          %371 = vmatmul.mubr.bf16.gmra.mrb[0].mxu0 %v244
          %v372 = vpop.f32.mrb[0].mxu0
          %v373 = vadd.f32 0.0, %v372
          %v374 = vpop.f32.mrb[0].mxu0
          %v375 = vpop.f32.mrb[0].mxu0
          %v376 = vadd.f32 0.0, %v375
          %v377 = vpop.f32.mrb[0].mxu0
          %378 = vmatprep.mubr.bf16.mxu0 0
          %379 = vmatmul.mubr.bf16.gmra.mrb[0].mxu0 %v245
          %v380 = vpop.f32.mrb[0].mxu0
          %v381 = vadd.f32 0.0, %v380
          %v382 = vpop.f32.mrb[0].mxu0
          %v383 = vpop.f32.mrb[0].mxu0
          %v384 = vadd.f32 0.0, %v383
          %v385 = vpop.f32.mrb[0].mxu0
          %386 = vmatprep.mubr.bf16.mxu0 0
          %387 = vmatmul.mubr.bf16.gmra.mrb[0].mxu0 %v246
          %v388 = vpop.f32.mrb[0].mxu0
          %v389 = vadd.f32 0.0, %v388
          %v390 = vpop.f32.mrb[0].mxu0
          %v391 = vpop.f32.mrb[0].mxu0
          %v392 = vadd.f32 0.0, %v391
          %v393 = vpop.f32.mrb[0].mxu0
          %394 = vmatprep.mubr.bf16.mxu0 0
          %395 = vmatmul.mubr.bf16.gmra.mrb[0].mxu0 %v247
          %v396 = vpop.f32.mrb[0].mxu0
          %v397 = vadd.f32 0.0, %v396
          %v398 = vpop.f32.mrb[0].mxu0
          %v399 = vpop.f32.mrb[0].mxu0
          %v400 = vadd.f32 0.0, %v399
          %v401 = vpop.f32.mrb[0].mxu0
          %402 = vmatprep.mubr.bf16.mxu0 0
          %403 = vmatmul.mubr.bf16.gmra.mrb[0].mxu0 %v248
          %v404 = vpop.f32.mrb[0].mxu0
          %v405 = vadd.f32 0.0, %v404
          %v406 = vpop.f32.mrb[0].mxu0
          %v407 = vpop.f32.mrb[0].mxu0
          %v408 = vadd.f32 0.0, %v407
          %v409 = vpop.f32.mrb[0].mxu0
          %410 = vmatprep.mubr.bf16.mxu0 0
          %411 = vmatmul.mubr.bf16.gmra.mrb[0].mxu0 %v249
          %v412 = vpop.f32.mrb[0].mxu0
          %v413 = vadd.f32 0.0, %v412
          %v414 = vpop.f32.mrb[0].mxu0
          %v415 = vpop.f32.mrb[0].mxu0
          %v416 = vadd.f32 0.0, %v415
          %v417 = vpop.f32.mrb[0].mxu0
          %418 = vmatprep.mubr.bf16.mxu0 0
          %419 = vmatmul.mubr.bf16.gmra.mrb[0].mxu0 %v250
          %v420 = vpop.f32.mrb[0].mxu0
          %v421 = vadd.f32 0.0, %v420
          %v422 = vpop.f32.mrb[0].mxu0
          %v423 = vpop.f32.mrb[0].mxu0
          %v424 = vadd.f32 0.0, %v423
          %v425 = vpop.f32.mrb[0].mxu0
          %426 = vmatprep.mubr.bf16.mxu0 0
          %427 = vmatmul.mubr.bf16.gmra.mrb[0].mxu0 %v251
          %v428 = vpop.f32.mrb[0].mxu0
          %v429 = vadd.f32 0.0, %v428
          %v430 = vpop.f32.mrb[0].mxu0
          %v431 = vpop.f32.mrb[0].mxu0
          %v432 = vadd.f32 0.0, %v431
          %v433 = vpop.f32.mrb[0].mxu0
          %434 = vmatprep.mubr.bf16.mxu0 0
          %435 = vmatmul.mubr.bf16.gmra.mrb[0].mxu0 %v252
          %v436 = vpop.f32.mrb[0].mxu0
          %v437 = vadd.f32 0.0, %v436
          %v438 = vpop.f32.mrb[0].mxu0
          %v439 = vpop.f32.mrb[0].mxu0
          %v440 = vadd.f32 0.0, %v439
          %v441 = vpop.f32.mrb[0].mxu0
          %442 = vmatprep.mubr.bf16.mxu0 0
          %443 = vmatmul.mubr.bf16.gmra.mrb[0].mxu0 %v253
          %v444 = vpop.f32.mrb[0].mxu0
          %v445 = vadd.f32 0.0, %v444
          %v446 = vpop.f32.mrb[0].mxu0
          %v447 = vpop.f32.mrb[0].mxu0
          %v448 = vadd.f32 0.0, %v447
          %v449 = vpop.f32.mrb[0].mxu0
          %450 = vmatprep.mubr.bf16.mxu0 0
          %451 = vmatmul.mubr.bf16.gmra.mrb[0].mxu0 %v254
          %v452 = vpop.f32.mrb[0].mxu0
          %v453 = vadd.f32 0.0, %v452
          %v454 = vpop.f32.mrb[0].mxu0
          %v455 = vpop.f32.mrb[0].mxu0
          %v456 = vadd.f32 0.0, %v455
          %v457 = vpop.f32.mrb[0].mxu0
          %458 = vmatprep.mubr.bf16.mxu0 0
          %459 = vmatmul.mubr.bf16.gmra.mrb[0].mxu0 %v255
          %v460 = vpop.f32.mrb[0].mxu0
          %v461 = vadd.f32 0.0, %v460
          %v462 = vpop.f32.mrb[0].mxu0
          %v463 = vpop.f32.mrb[0].mxu0
          %v464 = vadd.f32 0.0, %v463
          %v465 = vpop.f32.mrb[0].mxu0
          %466 = vmatprep.mubr.bf16.mxu0 0
          %467 = vmatmul.mubr.bf16.gmra.mrb[0].mxu0 %v256
          %v468 = vpop.f32.mrb[0].mxu0
          %v469 = vadd.f32 0.0, %v468
          %v470 = vpop.f32.mrb[0].mxu0
          %v471 = vpop.f32.mrb[0].mxu0
          %v472 = vadd.f32 0.0, %v471
          %v473 = vpop.f32.mrb[0].mxu0
          %474 = vmatprep.mubr.bf16.mxu0 0
          %475 = vmatmul.mubr.bf16.gmra.mrb[0].mxu0 %v257
          %v476 = vpop.f32.mrb[0].mxu0
          %v477 = vadd.f32 0.0, %v476
          %v478 = vpop.f32.mrb[0].mxu0
          %v479 = vpop.f32.mrb[0].mxu0
          %v480 = vadd.f32 0.0, %v479
          %v481 = vpop.f32.mrb[0].mxu0
          %482 = vdwg.mxu0
          %v483 = vpack.c.bf16 %v360, %v357
          %v484 = vpack.c.bf16 %v368, %v365
          %v485 = vpack.c.bf16 %v376, %v373
          %v486 = vpack.c.bf16 %v384, %v381
          %v487 = vpack.c.bf16 %v392, %v389
          %v488 = vpack.c.bf16 %v400, %v397
          %v489 = vpack.c.bf16 %v408, %v405
          %v490 = vpack.c.bf16 %v416, %v413
          %v491 = vpack.c.bf16 %v424, %v421
          %v492 = vpack.c.bf16 %v432, %v429
          %v493 = vpack.c.bf16 %v440, %v437
          %v494 = vpack.c.bf16 %v448, %v445
          %v495 = vpack.c.bf16 %v456, %v453
          %v496 = vpack.c.bf16 %v464, %v461
          %v497 = vpack.c.bf16 %v472, %v469
          %v498 = vpack.c.bf16 %v480, %v477
          %499 = vst [vmem:[#allocation4] sm:$0xff] %v483
          %500 = vst [vmem:[#allocation4 + $0x8] sm:$0xff] %v484
          %501 = vst [vmem:[#allocation4 + $0x10] sm:$0xff] %v485
          %502 = vst [vmem:[#allocation4 + $0x18] sm:$0xff] %v486
          %503 = vst [vmem:[#allocation4 + $0x20] sm:$0xff] %v487
          %504 = vst [vmem:[#allocation4 + $0x28] sm:$0xff] %v488
          %505 = vst [vmem:[#allocation4 + $0x30] sm:$0xff] %v489
          %506 = vst [vmem:[#allocation4 + $0x38] sm:$0xff] %v490
          %507 = vst [vmem:[#allocation4 + $0x40] sm:$0xff] %v491
          %508 = vst [vmem:[#allocation4 + $0x48] sm:$0xff] %v492
          %509 = vst [vmem:[#allocation4 + $0x50] sm:$0xff] %v493
          %510 = vst [vmem:[#allocation4 + $0x58] sm:$0xff] %v494
          %511 = vst [vmem:[#allocation4 + $0x60] sm:$0xff] %v495
          %512 = vst [vmem:[#allocation4 + $0x68] sm:$0xff] %v496
          %513 = vst [vmem:[#allocation4 + $0x70] sm:$0xff] %v497
          %514 = vst [vmem:[#allocation4 + $0x78] sm:$0xff] %v498
        $region44: #{tpu_custom_call.1} parent=27 // pred_fallthru
          _
        %s515 = smul.u32 %s24, 256
        %s516 = sshra.s32 %s515, 4
        %s517 = sand.u32 %s515, 15
        %s518 = smul.u32 %s516, 2
        %s519 = smul.addr %s518, 8
        %s520 = scalar_lea.vmem [#allocation2], %s519
        %v521 = vld [vmem:[%s520] sm:$0xff]
        %v522 = vld [vmem:[%s520 + $0x8] sm:$0xff]
        %v523 = vld [vmem:[%s520 + $0x10] sm:$0xff]
        %v524 = vld [vmem:[%s520 + $0x18] sm:$0xff]
        %v525 = vld [vmem:[%s520 + $0x20] sm:$0xff]
        %v526 = vld [vmem:[%s520 + $0x28] sm:$0xff]
        %v527 = vld [vmem:[%s520 + $0x30] sm:$0xff]
        %v528 = vld [vmem:[%s520 + $0x38] sm:$0xff]
        %v529 = vld [vmem:[%s520 + $0x40] sm:$0xff]
        %v530 = vld [vmem:[%s520 + $0x48] sm:$0xff]
        %v531 = vld [vmem:[%s520 + $0x50] sm:$0xff]
        %v532 = vld [vmem:[%s520 + $0x58] sm:$0xff]
        %v533 = vld [vmem:[%s520 + $0x60] sm:$0xff]
        %v534 = vld [vmem:[%s520 + $0x68] sm:$0xff]
        %v535 = vld [vmem:[%s520 + $0x70] sm:$0xff]
        %v536 = vld [vmem:[%s520 + $0x78] sm:$0xff]
        %v537 = vld [vmem:[%s520 + $0x80] sm:$0xff]
        %v538 = vld [vmem:[%s520 + $0x88] sm:$0xff]
        %v539 = vld [vmem:[%s520 + $0x90] sm:$0xff]
        %v540 = vld [vmem:[%s520 + $0x98] sm:$0xff]
        %v541 = vld [vmem:[%s520 + $0xa0] sm:$0xff]
        %v542 = vld [vmem:[%s520 + $0xa8] sm:$0xff]
        %v543 = vld [vmem:[%s520 + $0xb0] sm:$0xff]
        %v544 = vld [vmem:[%s520 + $0xb8] sm:$0xff]
        %v545 = vld [vmem:[%s520 + $0xc0] sm:$0xff]
        %v546 = vld [vmem:[%s520 + $0xc8] sm:$0xff]
        %v547 = vld [vmem:[%s520 + $0xd0] sm:$0xff]
        %v548 = vld [vmem:[%s520 + $0xd8] sm:$0xff]
        %v549 = vld [vmem:[%s520 + $0xe0] sm:$0xff]
        %v550 = vld [vmem:[%s520 + $0xe8] sm:$0xff]
        %v551 = vld [vmem:[%s520 + $0xf0] sm:$0xff]
        %v552 = vld [vmem:[%s520 + $0xf8] sm:$0xff]
        %v553 = vld [vmem:[#allocation4] sm:$0xff]
        %v554 = vld [vmem:[#allocation4 + $0x8] sm:$0xff]
        %v555 = vld [vmem:[#allocation4 + $0x10] sm:$0xff]
        %v556 = vld [vmem:[#allocation4 + $0x18] sm:$0xff]
        %v557 = vld [vmem:[#allocation4 + $0x20] sm:$0xff]
        %v558 = vld [vmem:[#allocation4 + $0x28] sm:$0xff]
        %v559 = vld [vmem:[#allocation4 + $0x30] sm:$0xff]
        %v560 = vld [vmem:[#allocation4 + $0x38] sm:$0xff]
        %v561 = vld [vmem:[#allocation4 + $0x40] sm:$0xff]
        %v562 = vld [vmem:[#allocation4 + $0x48] sm:$0xff]
        %v563 = vld [vmem:[#allocation4 + $0x50] sm:$0xff]
        %v564 = vld [vmem:[#allocation4 + $0x58] sm:$0xff]
        %v565 = vld [vmem:[#allocation4 + $0x60] sm:$0xff]
        %v566 = vld [vmem:[#allocation4 + $0x68] sm:$0xff]
        %v567 = vld [vmem:[#allocation4 + $0x70] sm:$0xff]
        %v568 = vld [vmem:[#allocation4 + $0x78] sm:$0xff]
        %v569 = vld [vmem:[%s177] sm:$0x1]
        %v571 = vlaneseq
        %v572 = vshrl.u32 %v571, 7
        %v573 = vsub.s32 0, %v572
        %v574 = vrot.slane %v569, %v573
        %576 = vmatprep.subr.bf16.mxu0 0
        %577 = vmatpush1.bf16.msra.mxu0 %v553
        %578 = vmatprep.subr.bf16.mxu0 0
        %579 = vmatpush1.bf16.msra.mxu0 %v554
        %580 = vmatprep.subr.bf16.mxu0 0
        %581 = vmatpush1.bf16.msra.mxu0 %v555
        %582 = vmatprep.subr.bf16.mxu0 0
        %583 = vmatpush1.bf16.msra.mxu0 %v556
        %584 = vmatprep.subr.bf16.mxu0 0
        %585 = vmatpush1.bf16.msra.mxu0 %v557
        %586 = vmatprep.subr.bf16.mxu0 0
        %587 = vmatpush1.bf16.msra.mxu0 %v558
        %588 = vmatprep.subr.bf16.mxu0 0
        %589 = vmatpush1.bf16.msra.mxu0 %v559
        %590 = vmatprep.subr.bf16.mxu0 0
        %591 = vmatpush1.bf16.msra.mxu0 %v560
        %592 = vmatprep.subr.bf16.mxu0 0
        %593 = vmatpush1.bf16.msra.mxu0 %v561
        %594 = vmatprep.subr.bf16.mxu0 0
        %595 = vmatpush1.bf16.msra.mxu0 %v562
        %596 = vmatprep.subr.bf16.mxu0 0
        %597 = vmatpush1.bf16.msra.mxu0 %v563
        %598 = vmatprep.subr.bf16.mxu0 0
        %599 = vmatpush1.bf16.msra.mxu0 %v564
        %600 = vmatprep.subr.bf16.mxu0 0
        %601 = vmatpush1.bf16.msra.mxu0 %v565
        %602 = vmatprep.subr.bf16.mxu0 0
        %603 = vmatpush1.bf16.msra.mxu0 %v566
        %604 = vmatprep.subr.bf16.mxu0 0
        %605 = vmatpush1.bf16.msra.mxu0 %v567
        %606 = vmatprep.subr.bf16.mxu0 0
        %607 = vmatpush1.bf16.msra.mxu0 %v568
        %608 = vmatprep.mubr.bf16.mxu0 %v522
        %609 = vmatmul.mubr.bf16.gmra.mrb[0].mxu0 %v521
        %v610 = vpop.f32.mrb[0].mxu0
        %v611 = vadd.f32 %v574, %v610
        %v612 = vpop.f32.mrb[0].mxu0
        %v613 = vpop.f32.mrb[0].mxu0
        %v614 = vadd.f32 %v574, %v613
        %v615 = vpop.f32.mrb[0].mxu0
        %616 = vmatprep.mubr.bf16.mxu0 %v524
        %617 = vmatmul.mubr.bf16.gmra.mrb[0].mxu0 %v523
        %v618 = vpop.f32.mrb[0].mxu0
        %v619 = vadd.f32 %v574, %v618
        %v620 = vpop.f32.mrb[0].mxu0
        %v621 = vpop.f32.mrb[0].mxu0
        %v622 = vadd.f32 %v574, %v621
        %v623 = vpop.f32.mrb[0].mxu0
        %624 = vmatprep.mubr.bf16.mxu0 %v526
        %625 = vmatmul.mubr.bf16.gmra.mrb[0].mxu0 %v525
        %v626 = vpop.f32.mrb[0].mxu0
        %v627 = vadd.f32 %v574, %v626
        %v628 = vpop.f32.mrb[0].mxu0
        %v629 = vpop.f32.mrb[0].mxu0
        %v630 = vadd.f32 %v574, %v629
        %v631 = vpop.f32.mrb[0].mxu0
        %632 = vmatprep.mubr.bf16.mxu0 %v528
        %633 = vmatmul.mubr.bf16.gmra.mrb[0].mxu0 %v527
        %v634 = vpop.f32.mrb[0].mxu0
        %v635 = vadd.f32 %v574, %v634
        %v636 = vpop.f32.mrb[0].mxu0
        %v637 = vpop.f32.mrb[0].mxu0
        %v638 = vadd.f32 %v574, %v637
        %v639 = vpop.f32.mrb[0].mxu0
        %640 = vmatprep.mubr.bf16.mxu0 %v530
        %641 = vmatmul.mubr.bf16.gmra.mrb[0].mxu0 %v529
        %v642 = vpop.f32.mrb[0].mxu0
        %v643 = vadd.f32 %v574, %v642
        %v644 = vpop.f32.mrb[0].mxu0
        %v645 = vpop.f32.mrb[0].mxu0
        %v646 = vadd.f32 %v574, %v645
        %v647 = vpop.f32.mrb[0].mxu0
        %648 = vmatprep.mubr.bf16.mxu0 %v532
        %649 = vmatmul.mubr.bf16.gmra.mrb[0].mxu0 %v531
        %v650 = vpop.f32.mrb[0].mxu0
        %v651 = vadd.f32 %v574, %v650
        %v652 = vpop.f32.mrb[0].mxu0
        %v653 = vpop.f32.mrb[0].mxu0
        %v654 = vadd.f32 %v574, %v653
        %v655 = vpop.f32.mrb[0].mxu0
        %656 = vmatprep.mubr.bf16.mxu0 %v534
        %657 = vmatmul.mubr.bf16.gmra.mrb[0].mxu0 %v533
        %v658 = vpop.f32.mrb[0].mxu0
        %v659 = vadd.f32 %v574, %v658
        %v660 = vpop.f32.mrb[0].mxu0
        %v661 = vpop.f32.mrb[0].mxu0
        %v662 = vadd.f32 %v574, %v661
        %v663 = vpop.f32.mrb[0].mxu0
        %664 = vmatprep.mubr.bf16.mxu0 %v536
        %665 = vmatmul.mubr.bf16.gmra.mrb[0].mxu0 %v535
        %v666 = vpop.f32.mrb[0].mxu0
        %v667 = vadd.f32 %v574, %v666
        %v668 = vpop.f32.mrb[0].mxu0
        %v669 = vpop.f32.mrb[0].mxu0
        %v670 = vadd.f32 %v574, %v669
        %v671 = vpop.f32.mrb[0].mxu0
        %672 = vmatprep.mubr.bf16.mxu0 %v538
        %673 = vmatmul.mubr.bf16.gmra.mrb[0].mxu0 %v537
        %v674 = vpop.f32.mrb[0].mxu0
        %v675 = vadd.f32 %v574, %v674
        %v676 = vpop.f32.mrb[0].mxu0
        %v677 = vpop.f32.mrb[0].mxu0
        %v678 = vadd.f32 %v574, %v677
        %v679 = vpop.f32.mrb[0].mxu0
        %680 = vmatprep.mubr.bf16.mxu0 %v540
        %681 = vmatmul.mubr.bf16.gmra.mrb[0].mxu0 %v539
        %v682 = vpop.f32.mrb[0].mxu0
        %v683 = vadd.f32 %v574, %v682
        %v684 = vpop.f32.mrb[0].mxu0
        %v685 = vpop.f32.mrb[0].mxu0
        %v686 = vadd.f32 %v574, %v685
        %v687 = vpop.f32.mrb[0].mxu0
        %688 = vmatprep.mubr.bf16.mxu0 %v542
        %689 = vmatmul.mubr.bf16.gmra.mrb[0].mxu0 %v541
        %v690 = vpop.f32.mrb[0].mxu0
        %v691 = vadd.f32 %v574, %v690
        %v692 = vpop.f32.mrb[0].mxu0
        %v693 = vpop.f32.mrb[0].mxu0
        %v694 = vadd.f32 %v574, %v693
        %v695 = vpop.f32.mrb[0].mxu0
        %696 = vmatprep.mubr.bf16.mxu0 %v544
        %697 = vmatmul.mubr.bf16.gmra.mrb[0].mxu0 %v543
        %v698 = vpop.f32.mrb[0].mxu0
        %v699 = vadd.f32 %v574, %v698
        %v700 = vpop.f32.mrb[0].mxu0
        %v701 = vpop.f32.mrb[0].mxu0
        %v702 = vadd.f32 %v574, %v701
        %v703 = vpop.f32.mrb[0].mxu0
        %704 = vmatprep.mubr.bf16.mxu0 %v546
        %705 = vmatmul.mubr.bf16.gmra.mrb[0].mxu0 %v545
        %v706 = vpop.f32.mrb[0].mxu0
        %v707 = vadd.f32 %v574, %v706
        %v708 = vpop.f32.mrb[0].mxu0
        %v709 = vpop.f32.mrb[0].mxu0
        %v710 = vadd.f32 %v574, %v709
        %v711 = vpop.f32.mrb[0].mxu0
        %712 = vmatprep.mubr.bf16.mxu0 %v548
        %713 = vmatmul.mubr.bf16.gmra.mrb[0].mxu0 %v547
        %v714 = vpop.f32.mrb[0].mxu0
        %v715 = vadd.f32 %v574, %v714
        %v716 = vpop.f32.mrb[0].mxu0
        %v717 = vpop.f32.mrb[0].mxu0
        %v718 = vadd.f32 %v574, %v717
        %v719 = vpop.f32.mrb[0].mxu0
        %720 = vmatprep.mubr.bf16.mxu0 %v550
        %721 = vmatmul.mubr.bf16.gmra.mrb[0].mxu0 %v549
        %v722 = vpop.f32.mrb[0].mxu0
        %v723 = vadd.f32 %v574, %v722
        %v724 = vpop.f32.mrb[0].mxu0
        %v725 = vpop.f32.mrb[0].mxu0
        %v726 = vadd.f32 %v574, %v725
        %v727 = vpop.f32.mrb[0].mxu0
        %728 = vmatprep.mubr.bf16.mxu0 %v552
        %729 = vmatmul.mubr.bf16.gmra.mrb[0].mxu0 %v551
        %v730 = vpop.f32.mrb[0].mxu0
        %v731 = vadd.f32 %v574, %v730
        %v732 = vpop.f32.mrb[0].mxu0
        %v733 = vpop.f32.mrb[0].mxu0
        %v734 = vadd.f32 %v574, %v733
        %v735 = vpop.f32.mrb[0].mxu0
        %736 = vdwg.mxu0
        %p737 = scmp.lt.s32.totalorder %s23, 2
        // Predicated region
        $region45: #{tpu_custom_call.1} parent=27 // pred_check
          %p738 = pneg %p737
        $region46: #{tpu_custom_call.1} parent=27 // pred_check_branch
          %740 = sbr.rel (%p738) target = $region48
        $region47: #{tpu_custom_call.1} parent=27 // pred_region
          %v741 = vmax.f32 %v611, 0.0
          %v742 = vmax.f32 %v614, 0.0
          %v743 = vmax.f32 %v619, 0.0
          %v744 = vmax.f32 %v622, 0.0
          %v745 = vmax.f32 %v627, 0.0
          %v746 = vmax.f32 %v630, 0.0
          %v747 = vmax.f32 %v635, 0.0
          %v748 = vmax.f32 %v638, 0.0
          %v749 = vmax.f32 %v643, 0.0
          %v750 = vmax.f32 %v646, 0.0
          %v751 = vmax.f32 %v651, 0.0
          %v752 = vmax.f32 %v654, 0.0
          %v753 = vmax.f32 %v659, 0.0
          %v754 = vmax.f32 %v662, 0.0
          %v755 = vmax.f32 %v667, 0.0
          %v756 = vmax.f32 %v670, 0.0
          %v757 = vmax.f32 %v675, 0.0
          %v758 = vmax.f32 %v678, 0.0
          %v759 = vmax.f32 %v683, 0.0
          %v760 = vmax.f32 %v686, 0.0
          %v761 = vmax.f32 %v691, 0.0
          %v762 = vmax.f32 %v694, 0.0
          %v763 = vmax.f32 %v699, 0.0
          %v764 = vmax.f32 %v702, 0.0
          %v765 = vmax.f32 %v707, 0.0
          %v766 = vmax.f32 %v710, 0.0
          %v767 = vmax.f32 %v715, 0.0
          %v768 = vmax.f32 %v718, 0.0
          %v769 = vmax.f32 %v723, 0.0
          %v770 = vmax.f32 %v726, 0.0
          %v771 = vmax.f32 %v731, 0.0
          %v772 = vmax.f32 %v734, 0.0
          %v773 = vpack.c.bf16 %v742, %v741
          %v774 = vpack.c.bf16 %v744, %v743
          %v775 = vpack.c.bf16 %v746, %v745
          %v776 = vpack.c.bf16 %v748, %v747
          %v777 = vpack.c.bf16 %v750, %v749
          %v778 = vpack.c.bf16 %v752, %v751
          %v779 = vpack.c.bf16 %v754, %v753
          %v780 = vpack.c.bf16 %v756, %v755
          %v781 = vpack.c.bf16 %v758, %v757
          %v782 = vpack.c.bf16 %v760, %v759
          %v783 = vpack.c.bf16 %v762, %v761
          %v784 = vpack.c.bf16 %v764, %v763
          %v785 = vpack.c.bf16 %v766, %v765
          %v786 = vpack.c.bf16 %v768, %v767
          %v787 = vpack.c.bf16 %v770, %v769
          %v788 = vpack.c.bf16 %v772, %v771
          %s789 = smul.addr %s516, 8
          %s790 = scalar_lea.vmem [#allocation3], %s789
          %791 = vst [vmem:[%s790] sm:$0xff] %v773
          %792 = vst [vmem:[%s790 + $0x8] sm:$0xff] %v774
          %793 = vst [vmem:[%s790 + $0x10] sm:$0xff] %v775
          %794 = vst [vmem:[%s790 + $0x18] sm:$0xff] %v776
          %795 = vst [vmem:[%s790 + $0x20] sm:$0xff] %v777
          %796 = vst [vmem:[%s790 + $0x28] sm:$0xff] %v778
          %797 = vst [vmem:[%s790 + $0x30] sm:$0xff] %v779
          %798 = vst [vmem:[%s790 + $0x38] sm:$0xff] %v780
          %799 = vst [vmem:[%s790 + $0x40] sm:$0xff] %v781
          %800 = vst [vmem:[%s790 + $0x48] sm:$0xff] %v782
          %801 = vst [vmem:[%s790 + $0x50] sm:$0xff] %v783
          %802 = vst [vmem:[%s790 + $0x58] sm:$0xff] %v784
          %803 = vst [vmem:[%s790 + $0x60] sm:$0xff] %v785
          %804 = vst [vmem:[%s790 + $0x68] sm:$0xff] %v786
          %805 = vst [vmem:[%s790 + $0x70] sm:$0xff] %v787
          %806 = vst [vmem:[%s790 + $0x78] sm:$0xff] %v788
        $region48: #{tpu_custom_call.1} parent=27 // pred_fallthru
          _
        %p807 = scmp.eq.s32.totalorder %s23, 2
        // Predicated region
        $region49: #{tpu_custom_call.1} parent=27 // pred_check
          %p808 = pneg %p807
        $region50: #{tpu_custom_call.1} parent=27 // pred_check_branch
          %810 = sbr.rel (%p808) target = $region52
        $region51: #{tpu_custom_call.1} parent=27 // pred_region
          %s811 = scalar_lea.vmem [#allocation9], %s515
          %812 = vst [vmem:[%s811] sm:$0xff] %v611
          %813 = vst [vmem:[%s811 + $0x8] sm:$0xff] %v614
          %814 = vst [vmem:[%s811 + $0x10] sm:$0xff] %v619
          %815 = vst [vmem:[%s811 + $0x18] sm:$0xff] %v622
          %816 = vst [vmem:[%s811 + $0x20] sm:$0xff] %v627
          %817 = vst [vmem:[%s811 + $0x28] sm:$0xff] %v630
          %818 = vst [vmem:[%s811 + $0x30] sm:$0xff] %v635
          %819 = vst [vmem:[%s811 + $0x38] sm:$0xff] %v638
          %820 = vst [vmem:[%s811 + $0x40] sm:$0xff] %v643
          %821 = vst [vmem:[%s811 + $0x48] sm:$0xff] %v646
          %822 = vst [vmem:[%s811 + $0x50] sm:$0xff] %v651
          %823 = vst [vmem:[%s811 + $0x58] sm:$0xff] %v654
          %824 = vst [vmem:[%s811 + $0x60] sm:$0xff] %v659
          %825 = vst [vmem:[%s811 + $0x68] sm:$0xff] %v662
          %826 = vst [vmem:[%s811 + $0x70] sm:$0xff] %v667
          %827 = vst [vmem:[%s811 + $0x78] sm:$0xff] %v670
          %828 = vst [vmem:[%s811 + $0x80] sm:$0xff] %v675
          %829 = vst [vmem:[%s811 + $0x88] sm:$0xff] %v678
          %830 = vst [vmem:[%s811 + $0x90] sm:$0xff] %v683
          %831 = vst [vmem:[%s811 + $0x98] sm:$0xff] %v686
          %832 = vst [vmem:[%s811 + $0xa0] sm:$0xff] %v691
          %833 = vst [vmem:[%s811 + $0xa8] sm:$0xff] %v694
          %834 = vst [vmem:[%s811 + $0xb0] sm:$0xff] %v699
          %835 = vst [vmem:[%s811 + $0xb8] sm:$0xff] %v702
          %836 = vst [vmem:[%s811 + $0xc0] sm:$0xff] %v707
          %837 = vst [vmem:[%s811 + $0xc8] sm:$0xff] %v710
          %838 = vst [vmem:[%s811 + $0xd0] sm:$0xff] %v715
          %839 = vst [vmem:[%s811 + $0xd8] sm:$0xff] %v718
          %840 = vst [vmem:[%s811 + $0xe0] sm:$0xff] %v723
          %841 = vst [vmem:[%s811 + $0xe8] sm:$0xff] %v726
          %842 = vst [vmem:[%s811 + $0xf0] sm:$0xff] %v731
          %843 = vst [vmem:[%s811 + $0xf8] sm:$0xff] %v734
        $region52: #{tpu_custom_call.1} parent=27 // pred_fallthru
          _
        // Predicated region
        $region53: #{tpu_custom_call.1} parent=27 // pred_check
          %p844 = pneg %p96
        $region54: #{tpu_custom_call.1} parent=27 // pred_check_branch
          %846 = sbr.rel (%p844) target = $region56
        $region55: #{tpu_custom_call.1} parent=27 // pred_region
          %s848 = ssub.s32 4096, 4096
          %849 = vsyncadd [#allocation8], %s848
          %s850 = sshll.u32 [#allocation9], 4
          %s851 = int_to_ptr.vmem [resolvable:$true] %s850
          %856 = dma.vmem_to_hbm [thread:$0]  %s851, 4096, %s4, [#allocation8], 128, 128, 8
        $region56: #{tpu_custom_call.1} parent=27 // pred_fallthru
          _
        // Predicated region
        $region57: #{tpu_custom_call.1} parent=27 // pred_check
          %p857 = pneg %p96
        $region58: #{tpu_custom_call.1} parent=27 // pred_check_branch
          %859 = sbr.rel (%p857) target = $region60
        $region59: #{tpu_custom_call.1} parent=27 // pred_region
          %860 = dma.done [#allocation8], 4096
        $region60: #{tpu_custom_call.1} parent=27 // pred_fallthru
          _
      $region28: #{tpu_custom_call.1} parent=5 // pred_fallthru
        _
      %p861 = scmp.le.s32.totalorder 2, %s14
      // Predicated region
      $region61: #{tpu_custom_call.1} parent=5 // pred_check
        %p862 = pneg %p861
      $region62: #{tpu_custom_call.1} parent=5 // pred_check_branch
        %864 = sbr.rel (%p862) target = $region64
      $region63: #{tpu_custom_call.1} parent=5 // pred_region
        %s865 = ssub.s32 %s14, 2
      $region64: #{tpu_custom_call.1} parent=5 // pred_fallthru
        _
    $region6: #{tpu_custom_call.1} parent=1 // loop_footer
      %s18 = sadd.s32 1, %s14
    $region7: #{tpu_custom_call.1} parent=1 // loop_footer_branch
      %13 = sbr.rel target = $region3
    $region8: #{tpu_custom_call.1} parent=1 // loop_exit
      _
    %866 = vsyncpa [#allocation7], 1
    %s867 = scalar_lea.sflag [#allocation7], 1
    %868 = vsyncpa %s867, 1
    %869 = vsyncpa [#allocation8], 1
    %s870 = scalar_lea.sflag [#allocation8], 1
    %871 = vsyncpa %s870, 1
  %872 = vsyncmov [#allocation5]
  %s873 = vpop.sfrf %872
  %p874 = scmp.eq.s32.totalorder %s873, 0
  %p875 = pneg %p874
  %877 = shalt.err (%p875)
  %s878 = scalar_lea.sflag [#allocation5], 1
  %879 = vsyncmov %s878
  %s880 = vpop.sfrf %879
  %p881 = scmp.eq.s32.totalorder %s880, 0
  %p882 = pneg %p881
  %884 = shalt.err (%p882)

</llo_original>
